<compile_context>
chip_gen: v6e
topology: v6e:2x2x1
jax: 0.10.0
libtpu: 0.0.40
codegen_flags: <defaults>
</compile_context>

<pallas_src>
import functools

import jax
import jax.numpy as jnp
from jax import lax
from jax.experimental import pallas as pl
from jax.experimental.pallas import tpu as pltpu


# -----------------------------------------------------------------------------
# Fused kernel:
#   grid = (HW_tiles,)   -- reduction axis over spatial positions
#   img_ref   : (B, C, thw) f32   streamed tile of the image, lane-dense on HW
#   wconv_ref : (C, F)      f32   backbone stand-in (1x1 conv) weight, resident
#   bconv_ref : (1, F)      f32
#   wlin_ref  : (F, E)      f32   Linear weight (transposed PyTorch layout), resident
#   blin_ref  : (1, E)      f32
#   gamma_ref : (1, E)      f32   BatchNorm1d affine params
#   beta_ref  : (1, E)      f32
#   out_ref   : (B, E)      f32   final embeddings (written at last grid step)
#   acc_ref   : (B, C)      f32   VMEM scratch: running spatial sum
# -----------------------------------------------------------------------------
def encoder_kernel(img_ref, wconv_ref, bconv_ref, wlin_ref, blin_ref,
                   gamma_ref, beta_ref, out_ref, acc_ref, *, inv_hw, eps):
    h = pl.program_id(0)

    @pl.when(h == 0)
    def _init():
        acc_ref[...] = jnp.zeros_like(acc_ref)

    # Hot loop: lane-dense spatial sum of this HW tile (memory-bound streaming).
    acc_ref[...] += jnp.sum(img_ref[...], axis=-1)                      # (B, C)

    @pl.when(h == pl.num_programs(0) - 1)
    def _finalize():
        # Global average pool (single multiply, outside the hot loop).
        pooled = acc_ref[...] * inv_hw                                  # (B, C)
        # Backbone stand-in: 1x1 conv commuted with GAP (exact by linearity).
        feat = jnp.dot(pooled, wconv_ref[...],
                       preferred_element_type=jnp.float32) + bconv_ref[...]   # (B, F)
        # Linear(F -> E)
        z = jnp.dot(feat, wlin_ref[...],
                    preferred_element_type=jnp.float32) + blin_ref[...]       # (B, E)
        # BatchNorm1d, training mode: biased batch statistics over the batch axis.
        mean = jnp.mean(z, axis=0, keepdims=True)
        var = jnp.mean((z - mean) ** 2, axis=0, keepdims=True)
        x_hat = (z - mean) * lax.rsqrt(var + eps)
        out_ref[...] = gamma_ref[...] * x_hat + beta_ref[...]


def encoder_cnn_forward(images_nchw, params, *, tile_hw=512):
    """images_nchw: (B, C, H, W) float32, matching the PyTorch call convention."""
    B, C, H, W = images_nchw.shape
    HW = H * W
    F = params["w_conv"].shape[1]
    E = params["w_lin"].shape[1]

    # NCHW -> (B, C, HW): a free reshape (no transpose); the large spatial axis
    # becomes the lane dimension for dense vector loads.
    img = images_nchw.reshape(B, C, HW)

    thw = min(tile_hw, HW)
    # Zero-pad HW to a multiple of the tile: zeros do not change the spatial sum,
    # and the mean divides by the true HW baked into the kernel.
    pad = (-HW) % thw
    if pad:
        img = jnp.pad(img, ((0, 0), (0, 0), (0, pad)))
    n_tiles = (HW + pad) // thw

    kernel = functools.partial(encoder_kernel, inv_hw=1.0 / HW, eps=1e-5)

    return pl.pallas_call(
        kernel,
        out_shape=jax.ShapeDtypeStruct((B, E), jnp.float32),
        grid_spec=pltpu.PrefetchScalarGridSpec(
            num_scalar_prefetch=0,
            grid=(n_tiles,),
            in_specs=[
                # Streamed image tile (double-buffered HBM->VMEM pipeline).
                pl.BlockSpec((B, C, thw), lambda h: (0, 0, h)),
                # Small parameters: constant block index -> DMA'd once, VMEM-resident.
                pl.BlockSpec((C, F), lambda h: (0, 0)),
                pl.BlockSpec((1, F), lambda h: (0, 0)),
                pl.BlockSpec((F, E), lambda h: (0, 0)),
                pl.BlockSpec((1, E), lambda h: (0, 0)),
                pl.BlockSpec((1, E), lambda h: (0, 0)),
                pl.BlockSpec((1, E), lambda h: (0, 0)),
            ],
            # Output resident across the reduction axis; written only at finalize.
            out_specs=pl.BlockSpec((B, E), lambda h: (0, 0)),
            scratch_shapes=[pltpu.VMEM((B, C), jnp.float32)],
        ),
        compiler_params=pltpu.CompilerParams(
            dimension_semantics=("arbitrary",),
        ),
    )(img, params["w_conv"], params["b_conv"], params["w_lin"],
      params["b_lin"], params["bn_gamma"], params["bn_beta"])


def encoder_cnn_reference(images_nchw, params):
    """Pure-JAX reference (same math, used for a correctness check)."""
    B, C, H, W = images_nchw.shape
    pooled = jnp.mean(images_nchw.reshape(B, C, H * W), axis=-1)          # (B, C)
    feat = pooled @ params["w_conv"] + params["b_conv"]                   # (B, F)
    z = feat @ params["w_lin"] + params["b_lin"]                          # (B, E)
    mean = jnp.mean(z, axis=0, keepdims=True)
    var = jnp.mean((z - mean) ** 2, axis=0, keepdims=True)
    return params["bn_gamma"] * (z - mean) * lax.rsqrt(var + 1e-5) + params["bn_beta"]


def init_params(key, c_in, feat_dim, embed_size):
    k0, k1, k2, k3 = jax.random.split(key, 4)
    return {
        # backbone stand-in (1x1 conv weights)
        "w_conv": jax.random.normal(k0, (c_in, feat_dim), jnp.float32) * 0.1,
        "b_conv": jax.random.normal(k1, (1, feat_dim), jnp.float32) * 0.01,
        # self.linear = nn.Linear(resnet.fc.in_features, embed_size)
        "w_lin": jax.random.normal(k2, (feat_dim, embed_size), jnp.float32) * 0.05,
        "b_lin": jax.random.normal(k3, (1, embed_size), jnp.float32) * 0.01,
        # self.bn = nn.BatchNorm1d(embed_size, momentum=0.01) -> gamma=1, beta=0
        "bn_gamma": jnp.ones((1, embed_size), jnp.float32),
        "bn_beta": jnp.zeros((1, embed_size), jnp.float32),
    }


if __name__ == "__main__":
    key = jax.random.PRNGKey(0)
    # Small, lane/sublane-friendly stand-ins: B=8 (full f32 sublane), C=4,
    # H=W=16, FEAT_DIM=256 (stands in for resnet.fc.in_features=2048), EMBED=128.
    B, C, H, W = 8, 4, 16, 16
    FEAT_DIM = 256
    EMBED = 128

    k_img, k_par = jax.random.split(key)
    images = jax.random.normal(k_img, (B, C, H, W), jnp.float32)
    params = init_params(k_par, C, FEAT_DIM, EMBED)

    # tile_hw=128 -> a 2-step HW grid at this demo size, exercising the
    # accumulate/finalize pipeline; at 224x224 the default 512 tile streams HW.
    out = encoder_cnn_forward(images, params, tile_hw=128)
    out = jax.block_until_ready(out)
    assert out.shape == (B, EMBED) and out.dtype == jnp.float32

    ref = jax.block_until_ready(encoder_cnn_reference(images, params))
    assert jnp.allclose(out, ref, atol=1e-4, rtol=1e-4), float(jnp.max(jnp.abs(out - ref)))

    print("KERNEL_OK")
</pallas_src>

<mosaic_0001>
module attributes {stable_mosaic.version = 11 : i64} {
  func.func @encoder_kernel(%arg0: i32, %arg1: memref<8x4x128xf32, #tpu.memory_space<vmem>>, %arg2: memref<4x256xf32, #tpu.memory_space<vmem>>, %arg3: memref<1x256xf32, #tpu.memory_space<vmem>>, %arg4: memref<256x128xf32, #tpu.memory_space<vmem>>, %arg5: memref<1x128xf32, #tpu.memory_space<vmem>>, %arg6: memref<1x128xf32, #tpu.memory_space<vmem>>, %arg7: memref<1x128xf32, #tpu.memory_space<vmem>>, %arg8: memref<8x128xf32, #tpu.memory_space<vmem>>, %arg9: memref<8x4xf32, #tpu.memory_space<vmem>>) attributes {dimension_semantics = [#tpu.dimension_semantics<arbitrary>], iteration_bounds = array<i64: 2>, scalar_prefetch = 0 : i64, scratch_operands = 1 : i64, tpu.core_type = #tpu.core_type<tc>, window_params = [{transform_indices = @transform_0, window_bounds = array<i64: 8, 4, 128>}, {pipeline_mode = #tpu.pipeline_mode<synchronous>, transform_indices = @transform_1, window_bounds = array<i64: 4, 256>}, {pipeline_mode = #tpu.pipeline_mode<synchronous>, transform_indices = @transform_2, window_bounds = array<i64: 1, 256>}, {pipeline_mode = #tpu.pipeline_mode<synchronous>, transform_indices = @transform_3, window_bounds = array<i64: 256, 128>}, {pipeline_mode = #tpu.pipeline_mode<synchronous>, transform_indices = @transform_4, window_bounds = array<i64: 1, 128>}, {pipeline_mode = #tpu.pipeline_mode<synchronous>, transform_indices = @transform_5, window_bounds = array<i64: 1, 128>}, {pipeline_mode = #tpu.pipeline_mode<synchronous>, transform_indices = @transform_6, window_bounds = array<i64: 1, 128>}, {pipeline_mode = #tpu.pipeline_mode<synchronous>, transform_indices = @transform_7, window_bounds = array<i64: 8, 128>}]} {
    %c0_i32 = arith.constant 0 : i32
    %0 = arith.cmpi eq, %arg0, %c0_i32 : i32
    %1 = arith.extui %0 : i1 to i32
    %c0_i32_0 = arith.constant 0 : i32
    %2 = arith.cmpi ne, %1, %c0_i32_0 : i32
    scf.if %2 {
      %cst_8 = arith.constant 0.000000e+00 : f32
      %11 = vector.broadcast %cst_8 : f32 to vector<8x4xf32>
      %c0_9 = arith.constant 0 : index
      %c0_10 = arith.constant 0 : index
      %12 = vector.load %arg9[%c0_9, %c0_10] : memref<8x4xf32, #tpu.memory_space<vmem>>, vector<8x4xf32>
      tpu.vector_store %arg9[%c0_9, %c0_10], %11 {strides = array<i32>} : memref<8x4xf32, #tpu.memory_space<vmem>>, vector<8x4xf32>,
    } else {
    }
    %c0 = arith.constant 0 : index
    %c0_1 = arith.constant 0 : index
    %3 = vector.load %arg9[%c0, %c0_1] : memref<8x4xf32, #tpu.memory_space<vmem>>, vector<8x4xf32>
    %c0_2 = arith.constant 0 : index
    %c0_3 = arith.constant 0 : index
    %c0_4 = arith.constant 0 : index
    %4 = vector.load %arg1[%c0_2, %c0_3, %c0_4] : memref<8x4x128xf32, #tpu.memory_space<vmem>>, vector<8x4x128xf32>
    %cst = arith.constant dense<0.000000e+00> : vector<8x4xf32>
    %5 = vector.multi_reduction <add>, %4, %cst [2] : vector<8x4x128xf32> to vector<8x4xf32>
    %6 = arith.addf %3, %5 : vector<8x4xf32>
    %c0_5 = arith.constant 0 : index
    %c0_6 = arith.constant 0 : index
    %7 = vector.load %arg9[%c0_5, %c0_6] : memref<8x4xf32, #tpu.memory_space<vmem>>, vector<8x4xf32>
    tpu.vector_store %arg9[%c0_5, %c0_6], %6 {strides = array<i32>} : memref<8x4xf32, #tpu.memory_space<vmem>>, vector<8x4xf32>,
    %c1_i32 = arith.constant 1 : i32
    %8 = arith.cmpi eq, %arg0, %c1_i32 : i32
    %9 = arith.extui %8 : i1 to i32
    %c0_i32_7 = arith.constant 0 : i32
    %10 = arith.cmpi ne, %9, %c0_i32_7 : i32
    scf.if %10 {
      %c0_8 = arith.constant 0 : index
      %c0_9 = arith.constant 0 : index
      %11 = vector.load %arg9[%c0_8, %c0_9] : memref<8x4xf32, #tpu.memory_space<vmem>>, vector<8x4xf32>
      %cst_10 = arith.constant 3.906250e-03 : f32
      %12 = vector.broadcast %cst_10 : f32 to vector<8x4xf32>
      %13 = arith.mulf %11, %12 : vector<8x4xf32>
      %c0_11 = arith.constant 0 : index
      %c0_12 = arith.constant 0 : index
      %14 = vector.load %arg2[%c0_11, %c0_12] : memref<4x256xf32, #tpu.memory_space<vmem>>, vector<4x256xf32>
      %cst_13 = arith.constant dense<0.000000e+00> : vector<8x256xf32>
      %15 = tpu.matmul %13, %14, %cst_13 {dimension_numbers = #tpu.dot_dimension_numbers<[1], [0], [0], [1], [0, 0, 1, 1], [], []>} : vector<8x4xf32>, vector<4x256xf32>, vector<8x256xf32> -> vector<8x256xf32>
      %c0_14 = arith.constant 0 : index
      %c0_15 = arith.constant 0 : index
      %16 = vector.load %arg3[%c0_14, %c0_15] : memref<1x256xf32, #tpu.memory_space<vmem>>, vector<1x256xf32>
      %17 = vector.broadcast %16 : vector<1x256xf32> to vector<8x256xf32>
      %18 = arith.addf %15, %17 : vector<8x256xf32>
      %c0_16 = arith.constant 0 : index
      %c0_17 = arith.constant 0 : index
      %19 = vector.load %arg4[%c0_16, %c0_17] : memref<256x128xf32, #tpu.memory_space<vmem>>, vector<256x128xf32>
      %cst_18 = arith.constant dense<0.000000e+00> : vector<8x128xf32>
      %20 = tpu.matmul %18, %19, %cst_18 {dimension_numbers = #tpu.dot_dimension_numbers<[1], [0], [0], [1], [0, 0, 1, 1], [], []>} : vector<8x256xf32>, vector<256x128xf32>, vector<8x128xf32> -> vector<8x128xf32>
      %c0_19 = arith.constant 0 : index
      %c0_20 = arith.constant 0 : index
      %21 = vector.load %arg5[%c0_19, %c0_20] : memref<1x128xf32, #tpu.memory_space<vmem>>, vector<1x128xf32>
      %22 = vector.broadcast %21 : vector<1x128xf32> to vector<8x128xf32>
      %23 = arith.addf %20, %22 : vector<8x128xf32>
      %cst_21 = arith.constant dense<0.000000e+00> : vector<128xf32>
      %24 = vector.multi_reduction <add>, %23, %cst_21 [0] : vector<8x128xf32> to vector<128xf32>
      %25 = vector.shape_cast %24 : vector<128xf32> to vector<1x128xf32>
      %cst_22 = arith.constant 8.000000e+00 : f32
      %26 = vector.broadcast %cst_22 : f32 to vector<1x128xf32>
      %27 = arith.divf %25, %26 : vector<1x128xf32>
      %28 = vector.broadcast %27 : vector<1x128xf32> to vector<8x128xf32>
      %29 = arith.subf %23, %28 : vector<8x128xf32>
      %30 = arith.mulf %29, %29 : vector<8x128xf32>
      %cst_23 = arith.constant dense<0.000000e+00> : vector<128xf32>
      %31 = vector.multi_reduction <add>, %30, %cst_23 [0] : vector<8x128xf32> to vector<128xf32>
      %32 = vector.shape_cast %31 : vector<128xf32> to vector<1x128xf32>
      %cst_24 = arith.constant 8.000000e+00 : f32
      %33 = vector.broadcast %cst_24 : f32 to vector<1x128xf32>
      %34 = arith.divf %32, %33 : vector<1x128xf32>
      %35 = vector.broadcast %27 : vector<1x128xf32> to vector<8x128xf32>
      %36 = arith.subf %23, %35 : vector<8x128xf32>
      %cst_25 = arith.constant 9.99999974E-6 : f32
      %37 = vector.broadcast %cst_25 : f32 to vector<1x128xf32>
      %38 = arith.addf %34, %37 : vector<1x128xf32>
      %39 = math.rsqrt %38 : vector<1x128xf32>
      %40 = vector.broadcast %39 : vector<1x128xf32> to vector<8x128xf32>
      %41 = arith.mulf %36, %40 : vector<8x128xf32>
      %c0_26 = arith.constant 0 : index
      %c0_27 = arith.constant 0 : index
      %42 = vector.load %arg6[%c0_26, %c0_27] : memref<1x128xf32, #tpu.memory_space<vmem>>, vector<1x128xf32>
      %43 = vector.broadcast %42 : vector<1x128xf32> to vector<8x128xf32>
      %44 = arith.mulf %43, %41 : vector<8x128xf32>
      %c0_28 = arith.constant 0 : index
      %c0_29 = arith.constant 0 : index
      %45 = vector.load %arg7[%c0_28, %c0_29] : memref<1x128xf32, #tpu.memory_space<vmem>>, vector<1x128xf32>
      %46 = vector.broadcast %45 : vector<1x128xf32> to vector<8x128xf32>
      %47 = arith.addf %44, %46 : vector<8x128xf32>
      %c0_30 = arith.constant 0 : index
      %c0_31 = arith.constant 0 : index
      %48 = vector.load %arg8[%c0_30, %c0_31] : memref<8x128xf32, #tpu.memory_space<vmem>>, vector<8x128xf32>
      tpu.vector_store %arg8[%c0_30, %c0_31], %47 {strides = array<i32>} : memref<8x128xf32, #tpu.memory_space<vmem>>, vector<8x128xf32>,
    } else {
    }
    return
  }
  func.func @transform_0(%arg0: i32) -> (i32, i32, i32) {
    %c0_i32 = arith.constant 0 : i32
    %c0_i32_0 = arith.constant 0 : i32
    %c0_i32_1 = arith.constant 0 : i32
    return %c0_i32, %c0_i32_0, %arg0 : i32, i32, i32
  }
  func.func @transform_1(%arg0: i32) -> (i32, i32) {
    %c0_i32 = arith.constant 0 : i32
    %c0_i32_0 = arith.constant 0 : i32
    %c0_i32_1 = arith.constant 0 : i32
    return %c0_i32, %c0_i32_0 : i32, i32
  }
  func.func @transform_2(%arg0: i32) -> (i32, i32) {
    %c0_i32 = arith.constant 0 : i32
    %c0_i32_0 = arith.constant 0 : i32
    %c0_i32_1 = arith.constant 0 : i32
    return %c0_i32, %c0_i32_0 : i32, i32
  }
  func.func @transform_3(%arg0: i32) -> (i32, i32) {
    %c0_i32 = arith.constant 0 : i32
    %c0_i32_0 = arith.constant 0 : i32
    %c0_i32_1 = arith.constant 0 : i32
    return %c0_i32, %c0_i32_0 : i32, i32
  }
  func.func @transform_4(%arg0: i32) -> (i32, i32) {
    %c0_i32 = arith.constant 0 : i32
    %c0_i32_0 = arith.constant 0 : i32
    %c0_i32_1 = arith.constant 0 : i32
    return %c0_i32, %c0_i32_0 : i32, i32
  }
  func.func @transform_5(%arg0: i32) -> (i32, i32) {
    %c0_i32 = arith.constant 0 : i32
    %c0_i32_0 = arith.constant 0 : i32
    %c0_i32_1 = arith.constant 0 : i32
    return %c0_i32, %c0_i32_0 : i32, i32
  }
  func.func @transform_6(%arg0: i32) -> (i32, i32) {
    %c0_i32 = arith.constant 0 : i32
    %c0_i32_0 = arith.constant 0 : i32
    %c0_i32_1 = arith.constant 0 : i32
    return %c0_i32, %c0_i32_0 : i32, i32
  }
  func.func @transform_7(%arg0: i32) -> (i32, i32) {
    %c0_i32 = arith.constant 0 : i32
    %c0_i32_0 = arith.constant 0 : i32
    %c0_i32_1 = arith.constant 0 : i32
    return %c0_i32, %c0_i32_0 : i32, i32
  }
}

</mosaic_0001>

<llo_original>
// kernel: tpu_custom_call.1
$region0: #{tpu_custom_call.1}
  #allocation0 [shape = 'u32[]', space=smem, size = 0x4, offset = 0x4, fixed_abs, tag = 'smem constant byte address 0x4 - core index']
  #allocation1 [shape = 'u32[144,128]{1,0:T(1,128)}', space=vmem, size = 0x12000, scoped, tag = 'internal scratch']
  #allocation2 [shape = 'f32[8,4]{1,0:T(8,128)}', space=vmem, size = 0x1000, scoped, tag = 'scratch operand']
  %s0 = inlined_call_operand.hbm [shape: f32[8,4,256], index: 0, kind: input, shape index: {}]
  %s1 = inlined_call_operand.hbm [shape: f32[4,256], index: 1, kind: input, shape index: {}]
  %s2 = inlined_call_operand.vmem [shape: f32[1,256], index: 2, kind: input, shape index: {}]
  %s3 = inlined_call_operand.hbm [shape: f32[256,128], index: 3, kind: input, shape index: {}]
  %s4 = inlined_call_operand.vmem [shape: f32[1,128], index: 4, kind: input, shape index: {}]
  %s5 = inlined_call_operand.vmem [shape: f32[1,128], index: 5, kind: input, shape index: {}]
  %s6 = inlined_call_operand.vmem [shape: f32[1,128], index: 6, kind: input, shape index: {}]
  %s7 = inlined_call_operand.hbm [shape: f32[8,128], index: 7, kind: output, shape index: {}]
  %s8 = sld [smem:[#allocation0]]
  $region81: #{tpu_custom_call.1} parent=0
    _
  %s10 = ssub.s32 1, %s8
  %s11 = scalar_select 0, %s10, %s8
  $region1: #{tpu_custom_call.1} parent=0
    #allocation3 [shape = 'u8[32768]{0}', space=vmem, size = 0x8000, scoped, tag = 'input window, operand 0']
    #allocation4 [shape = 's32[2]{0}', space=sflag, size = 0x8, scoped, tag = 'scoped memory for tpu_custom_call.1']
    #allocation5 [shape = 's32[2]{0}', space=sflag, size = 0x8, scoped, tag = 'scoped memory for tpu_custom_call.1']
    #allocation6 [shape = 'u8[4096]{0}', space=vmem, size = 0x1000, scoped, tag = 'input window, operand 1, single buffered']
    #allocation7 [shape = 's32[1]{0}', space=sflag, size = 0x4, scoped, tag = 'scoped memory for tpu_custom_call.1']
    #allocation8 [shape = 'u8[131072]{0}', space=vmem, size = 0x20000, scoped, tag = 'input window, operand 3, single buffered']
    #allocation9 [shape = 'u8[4096]{0}', space=vmem, size = 0x1000, scoped, tag = 'output window, operand 0, single buffered']
    %12 = vsyncpa [#allocation4], 0
    %s13 = scalar_lea.sflag [#allocation4], 1
    %14 = vsyncpa %s13, 0
    %15 = vsyncpa [#allocation7], 0
    %16 = vsyncpa [#allocation5], 0
    loop: start=0, step=1, limit=4
    $region2: #{tpu_custom_call.1} parent=1 // loop_pre_header
      _
    $region3: #{tpu_custom_call.1} parent=1 // loop_header
      %s18 = sphi 0, %s22
      %p19 = scmp.ge.s32.totalorder %s18, 4
      %s28 = sphi 0, %s30
      %s31 = sphi 0, %s28
      %s32 = sphi 0, %s31
      %s48 = sphi 0, %s32
      %s52 = sphi 0, %s52
      %s54 = sphi 0, %s52
      %s55 = sphi 0, %s54
      %s69 = sphi 0, %s55
      %s73 = sphi 0, %s73
      %s75 = sphi 0, %s73
      %s76 = sphi 0, %s75
      %s90 = sphi 0, %s76
      %s94 = sphi 0, %s94
      %s96 = sphi 0, %s94
      %s97 = sphi 0, %s96
      %s111 = sphi 0, %s97
      %s115 = sphi 0, %s115
      %s117 = sphi 0, %s115
      %s118 = sphi 0, %s117
      %s132 = sphi 0, %s118
      %s136 = sphi 0, %s136
      %s138 = sphi 0, %s136
      %s139 = sphi 0, %s138
      %s153 = sphi 0, %s139
      %s157 = sphi 0, %s157
      %s159 = sphi 0, %s157
      %s160 = sphi 0, %s159
      %s174 = sphi 0, %s160
      %s178 = sphi 0, %s178
      %s180 = sphi 0, %s178
      %s181 = sphi 0, %s180
      %s195 = sphi 0, %s181
    $region4: #{tpu_custom_call.1} parent=1 // loop_header_branch
      %21 = sbr.rel (%p19) target = $region8
    $region5: #{tpu_custom_call.1} parent=1 // loop_body
      %s23 = ssub.s32 %s18, 1
      %s24 = ssub.s32 %s18, 2
      %s25 = sadd.s32 %s18, 1
      %s26 = ssub.s32 %s18, %s25
      %p27 = scmp.eq.s32.totalorder %s26, 0
      %s29 = sadd.s32 %s28, 1
      %s30 = scalar_select %p27, %s28, %s29
      %p33 = pneg %p27
      %p34 = scmp.eq.s32.totalorder %s18, 1
      %p35 = por %p33, %p34
      %p36 = scmp.ne.s32.totalorder %s28, %s31
      %p37 = scmp.eq.s32.totalorder %s18, 0
      %p38 = por %p36, %p37
      %p39 = scmp.ne.s32.totalorder %s28, %s31
      %p40 = scmp.eq.s32.totalorder %s23, 1
      %p41 = por %p39, %p40
      %p42 = scmp.ne.s32.totalorder %s31, %s32
      %p43 = scmp.eq.s32.totalorder %s23, 0
      %p44 = por %p42, %p43
      %p45 = scmp.ne.s32.totalorder %s31, %s32
      %p46 = scmp.eq.s32.totalorder %s24, 1
      %p47 = por %p45, %p46
      %p49 = scmp.ne.s32.totalorder %s32, %s48
      %p50 = scmp.eq.s32.totalorder %s24, 0
      %p51 = por %p49, %p50
      %s53 = sadd.s32 %s52, 1
      %p56 = scmp.eq.s32.totalorder %s18, 1
      %p57 = scmp.ne.s32.totalorder %s52, %s54
      %p58 = scmp.eq.s32.totalorder %s18, 0
      %p59 = por %p57, %p58
      %p60 = scmp.ne.s32.totalorder %s52, %s54
      %p61 = scmp.eq.s32.totalorder %s23, 1
      %p62 = por %p60, %p61
      %p63 = scmp.ne.s32.totalorder %s54, %s55
      %p64 = scmp.eq.s32.totalorder %s23, 0
      %p65 = por %p63, %p64
      %p66 = scmp.ne.s32.totalorder %s54, %s55
      %p67 = scmp.eq.s32.totalorder %s24, 1
      %p68 = por %p66, %p67
      %p70 = scmp.ne.s32.totalorder %s55, %s69
      %p71 = scmp.eq.s32.totalorder %s24, 0
      %p72 = por %p70, %p71
      %s74 = sadd.s32 %s73, 1
      %p77 = scmp.eq.s32.totalorder %s18, 1
      %p78 = scmp.ne.s32.totalorder %s73, %s75
      %p79 = scmp.eq.s32.totalorder %s18, 0
      %p80 = por %p78, %p79
      %p81 = scmp.ne.s32.totalorder %s73, %s75
      %p82 = scmp.eq.s32.totalorder %s23, 1
      %p83 = por %p81, %p82
      %p84 = scmp.ne.s32.totalorder %s75, %s76
      %p85 = scmp.eq.s32.totalorder %s23, 0
      %p86 = por %p84, %p85
      %p87 = scmp.ne.s32.totalorder %s75, %s76
      %p88 = scmp.eq.s32.totalorder %s24, 1
      %p89 = por %p87, %p88
      %p91 = scmp.ne.s32.totalorder %s76, %s90
      %p92 = scmp.eq.s32.totalorder %s24, 0
      %p93 = por %p91, %p92
      %s95 = sadd.s32 %s94, 1
      %p98 = scmp.eq.s32.totalorder %s18, 1
      %p99 = scmp.ne.s32.totalorder %s94, %s96
      %p100 = scmp.eq.s32.totalorder %s18, 0
      %p101 = por %p99, %p100
      %p102 = scmp.ne.s32.totalorder %s94, %s96
      %p103 = scmp.eq.s32.totalorder %s23, 1
      %p104 = por %p102, %p103
      %p105 = scmp.ne.s32.totalorder %s96, %s97
      %p106 = scmp.eq.s32.totalorder %s23, 0
      %p107 = por %p105, %p106
      %p108 = scmp.ne.s32.totalorder %s96, %s97
      %p109 = scmp.eq.s32.totalorder %s24, 1
      %p110 = por %p108, %p109
      %p112 = scmp.ne.s32.totalorder %s97, %s111
      %p113 = scmp.eq.s32.totalorder %s24, 0
      %p114 = por %p112, %p113
      %s116 = sadd.s32 %s115, 1
      %p119 = scmp.eq.s32.totalorder %s18, 1
      %p120 = scmp.ne.s32.totalorder %s115, %s117
      %p121 = scmp.eq.s32.totalorder %s18, 0
      %p122 = por %p120, %p121
      %p123 = scmp.ne.s32.totalorder %s115, %s117
      %p124 = scmp.eq.s32.totalorder %s23, 1
      %p125 = por %p123, %p124
      %p126 = scmp.ne.s32.totalorder %s117, %s118
      %p127 = scmp.eq.s32.totalorder %s23, 0
      %p128 = por %p126, %p127
      %p129 = scmp.ne.s32.totalorder %s117, %s118
      %p130 = scmp.eq.s32.totalorder %s24, 1
      %p131 = por %p129, %p130
      %p133 = scmp.ne.s32.totalorder %s118, %s132
      %p134 = scmp.eq.s32.totalorder %s24, 0
      %p135 = por %p133, %p134
      %s137 = sadd.s32 %s136, 1
      %p140 = scmp.eq.s32.totalorder %s18, 1
      %p141 = scmp.ne.s32.totalorder %s136, %s138
      %p142 = scmp.eq.s32.totalorder %s18, 0
      %p143 = por %p141, %p142
      %p144 = scmp.ne.s32.totalorder %s136, %s138
      %p145 = scmp.eq.s32.totalorder %s23, 1
      %p146 = por %p144, %p145
      %p147 = scmp.ne.s32.totalorder %s138, %s139
      %p148 = scmp.eq.s32.totalorder %s23, 0
      %p149 = por %p147, %p148
      %p150 = scmp.ne.s32.totalorder %s138, %s139
      %p151 = scmp.eq.s32.totalorder %s24, 1
      %p152 = por %p150, %p151
      %p154 = scmp.ne.s32.totalorder %s139, %s153
      %p155 = scmp.eq.s32.totalorder %s24, 0
      %p156 = por %p154, %p155
      %s158 = sadd.s32 %s157, 1
      %p161 = scmp.eq.s32.totalorder %s18, 1
      %p162 = scmp.ne.s32.totalorder %s157, %s159
      %p163 = scmp.eq.s32.totalorder %s18, 0
      %p164 = por %p162, %p163
      %p165 = scmp.ne.s32.totalorder %s157, %s159
      %p166 = scmp.eq.s32.totalorder %s23, 1
      %p167 = por %p165, %p166
      %p168 = scmp.ne.s32.totalorder %s159, %s160
      %p169 = scmp.eq.s32.totalorder %s23, 0
      %p170 = por %p168, %p169
      %p171 = scmp.ne.s32.totalorder %s159, %s160
      %p172 = scmp.eq.s32.totalorder %s24, 1
      %p173 = por %p171, %p172
      %p175 = scmp.ne.s32.totalorder %s160, %s174
      %p176 = scmp.eq.s32.totalorder %s24, 0
      %p177 = por %p175, %p176
      %s179 = sadd.s32 %s178, 1
      %p182 = scmp.eq.s32.totalorder %s18, 1
      %p183 = scmp.ne.s32.totalorder %s178, %s180
      %p184 = scmp.eq.s32.totalorder %s18, 0
      %p185 = por %p183, %p184
      %p186 = scmp.ne.s32.totalorder %s178, %s180
      %p187 = scmp.eq.s32.totalorder %s23, 1
      %p188 = por %p186, %p187
      %p189 = scmp.ne.s32.totalorder %s180, %s181
      %p190 = scmp.eq.s32.totalorder %s23, 0
      %p191 = por %p189, %p190
      %p192 = scmp.ne.s32.totalorder %s180, %s181
      %p193 = scmp.eq.s32.totalorder %s24, 1
      %p194 = por %p192, %p193
      %p196 = scmp.ne.s32.totalorder %s181, %s195
      %p197 = scmp.eq.s32.totalorder %s24, 0
      %p198 = por %p196, %p197
      %p199 = scmp.le.s32.totalorder 1, %s18
      %p200 = scmp.lt.s32.totalorder %s18, 3
      %p201 = pnand %p199, %p200
      %p202 = pneg %p201
      // Predicated region
      $region9: #{tpu_custom_call.1} parent=5 // pred_check
        _
      $region10: #{tpu_custom_call.1} parent=5 // pred_check_branch
        %204 = sbr.rel (%p201) target = $region12
      $region11: #{tpu_custom_call.1} parent=5 // pred_region
        %s205 = ssub.s32 %s18, 1
        // Predicated region
        $region13: #{tpu_custom_call.1} parent=11 // pred_check
          %p206 = pneg %p65
        $region14: #{tpu_custom_call.1} parent=11 // pred_check_branch
          %208 = sbr.rel (%p206) target = $region16
        $region15: #{tpu_custom_call.1} parent=11 // pred_region
          %s210 = ssub.s32 128, 128
          %211 = vsyncadd [#allocation7], %s210
          %s213 = sshll.u32 [#allocation6], 4
          %s214 = int_to_ptr.vmem [resolvable:$true] %s213
          %216 = dma.hbm_to_vmem [thread:$0]  %s1, 128, %s214, [#allocation7]
        $region16: #{tpu_custom_call.1} parent=11 // pred_fallthru
          _
        // Predicated region
        $region17: #{tpu_custom_call.1} parent=11 // pred_check
          %p217 = pneg %p86
        $region18: #{tpu_custom_call.1} parent=11 // pred_check_branch
          %219 = sbr.rel (%p217) target = $region20
        $region19: #{tpu_custom_call.1} parent=11 // pred_region
          _
        $region20: #{tpu_custom_call.1} parent=11 // pred_fallthru
          _
        // Predicated region
        $region21: #{tpu_custom_call.1} parent=11 // pred_check
          %p220 = pneg %p107
        $region22: #{tpu_custom_call.1} parent=11 // pred_check_branch
          %222 = sbr.rel (%p220) target = $region24
        $region23: #{tpu_custom_call.1} parent=11 // pred_region
          %s224 = ssub.s32 4096, 4096
          %225 = vsyncadd [#allocation7], %s224
          %s226 = sshll.u32 [#allocation8], 4
          %s227 = int_to_ptr.vmem [resolvable:$true] %s226
          %232 = dma.hbm_to_vmem [thread:$0]  %s3, 4096, %s227, [#allocation7], 128, 128, 8
        $region24: #{tpu_custom_call.1} parent=11 // pred_fallthru
          _
        // Predicated region
        $region25: #{tpu_custom_call.1} parent=11 // pred_check
          %p233 = pneg %p128
        $region26: #{tpu_custom_call.1} parent=11 // pred_check_branch
          %235 = sbr.rel (%p233) target = $region28
        $region27: #{tpu_custom_call.1} parent=11 // pred_region
          _
        $region28: #{tpu_custom_call.1} parent=11 // pred_fallthru
          _
        // Predicated region
        $region29: #{tpu_custom_call.1} parent=11 // pred_check
          %p236 = pneg %p149
        $region30: #{tpu_custom_call.1} parent=11 // pred_check_branch
          %238 = sbr.rel (%p236) target = $region32
        $region31: #{tpu_custom_call.1} parent=11 // pred_region
          _
        $region32: #{tpu_custom_call.1} parent=11 // pred_fallthru
          _
        // Predicated region
        $region33: #{tpu_custom_call.1} parent=11 // pred_check
          %p239 = pneg %p170
        $region34: #{tpu_custom_call.1} parent=11 // pred_check_branch
          %241 = sbr.rel (%p239) target = $region36
        $region35: #{tpu_custom_call.1} parent=11 // pred_region
          _
        $region36: #{tpu_custom_call.1} parent=11 // pred_fallthru
          _
      $region12: #{tpu_custom_call.1} parent=5 // pred_fallthru
        _
      %p242 = scmp.lt.s32.totalorder %s18, 2
      // Predicated region
      $region37: #{tpu_custom_call.1} parent=5 // pred_check
        %p243 = pneg %p242
      $region38: #{tpu_custom_call.1} parent=5 // pred_check_branch
        %245 = sbr.rel (%p243) target = $region40
      $region39: #{tpu_custom_call.1} parent=5 // pred_region
        // Predicated region
        $region41: #{tpu_custom_call.1} parent=39 // pred_check
          %p246 = pneg %p38
        $region42: #{tpu_custom_call.1} parent=39 // pred_check_branch
          %248 = sbr.rel (%p246) target = $region44
        $region43: #{tpu_custom_call.1} parent=39 // pred_region
          %s249 = sand.u32 %s28, 1
          %s250 = scalar_lea.sflag [#allocation4], %s249
          %s251 = sand.u32 %s28, 1
          %s252 = smul.addr %s251, 32
          %s253 = scalar_lea.vmem [#allocation3], %s252
          %s255 = ssub.s32 512, 512
          %256 = vsyncadd %s250, %s255
          %s257 = smul.addr %s18, 64
          %s258 = scalar_lea.hbm %s0, %s257
          %s259 = sshll.u32 %s253, 4
          %s260 = int_to_ptr.vmem [resolvable:$true] %s259
          %265 = dma.hbm_to_vmem [thread:$0]  %s258, 512, %s260, %s250, 128, 64, 4
        $region44: #{tpu_custom_call.1} parent=39 // pred_fallthru
          _
      $region40: #{tpu_custom_call.1} parent=5 // pred_fallthru
        _
      %p266 = scmp.le.s32.totalorder 1, %s18
      %p267 = scmp.lt.s32.totalorder %s18, 3
      %p268 = pnand %p266, %p267
      %p269 = pneg %p268
      // Predicated region
      $region45: #{tpu_custom_call.1} parent=5 // pred_check
        _
      $region46: #{tpu_custom_call.1} parent=5 // pred_check_branch
        %271 = sbr.rel (%p268) target = $region48
      $region47: #{tpu_custom_call.1} parent=5 // pred_region
        %s272 = ssub.s32 %s18, 1
        %s273 = sand.u32 %s31, 1
        %s274 = scalar_lea.sflag [#allocation4], %s273
        %s275 = sand.u32 %s31, 1
        %s276 = smul.addr %s275, 32
        %s277 = scalar_lea.vmem [#allocation3], %s276
        // Predicated region
        $region49: #{tpu_custom_call.1} parent=47 // pred_check
          %p278 = pneg %p44
        $region50: #{tpu_custom_call.1} parent=47 // pred_check_branch
          %280 = sbr.rel (%p278) target = $region52
        $region51: #{tpu_custom_call.1} parent=47 // pred_region
          %281 = dma.done %s274, 512
        $region52: #{tpu_custom_call.1} parent=47 // pred_fallthru
          _
        // Predicated region
        $region53: #{tpu_custom_call.1} parent=47 // pred_check
          %p282 = pneg %p65
        $region54: #{tpu_custom_call.1} parent=47 // pred_check_branch
          %284 = sbr.rel (%p282) target = $region56
        $region55: #{tpu_custom_call.1} parent=47 // pred_region
          %285 = dma.done [#allocation7], 128
        $region56: #{tpu_custom_call.1} parent=47 // pred_fallthru
          _
        // Predicated region
        $region57: #{tpu_custom_call.1} parent=47 // pred_check
          %p286 = pneg %p107
        $region58: #{tpu_custom_call.1} parent=47 // pred_check_branch
          %288 = sbr.rel (%p286) target = $region60
        $region59: #{tpu_custom_call.1} parent=47 // pred_region
          %289 = dma.done [#allocation7], 4096
        $region60: #{tpu_custom_call.1} parent=47 // pred_fallthru
          _
        %s290 = sand.u32 %s31, 1
        %s291 = scalar_lea.sflag [#allocation4], %s290
        %s292 = sand.u32 %s31, 1
        %s293 = smul.addr %s292, 32
        %s294 = scalar_lea.vmem [#allocation3], %s293
        %p295 = pneg %p44
        %p296 = pneg %p41
        %p297 = pneg %p65
        %p298 = pneg %p62
        %p299 = pneg %p86
        %p300 = pneg %p83
        %p301 = pneg %p107
        %p302 = pneg %p104
        %p303 = pneg %p128
        %p304 = pneg %p125
        %p305 = pneg %p149
        %p306 = pneg %p146
        %p307 = pneg %p170
        %p308 = pneg %p167
        %p309 = pneg %p191
        %p310 = pneg %p188
        %p311 = scmp.eq.s32.totalorder %s23, 0
        // Predicated region
        $region61: #{tpu_custom_call.1} parent=47 // pred_check
          %p312 = pneg %p311
        $region62: #{tpu_custom_call.1} parent=47 // pred_check_branch
          %314 = sbr.rel (%p312) target = $region64
        $region63: #{tpu_custom_call.1} parent=47 // pred_region
          %vm315 = vcmask 31744
          %316 = vst.msk [vmem:[#allocation2] sm:$0xff] %vm315, 0.0
        $region64: #{tpu_custom_call.1} parent=47 // pred_fallthru
          _
        %v317 = vld [vmem:[#allocation2] sm:$0xff]
        %v318 = vld [vmem:[%s277] sm:$0xf]
        %v319 = vld [vmem:[%s277 + $0x4] sm:$0xf]
        %v320 = vld [vmem:[%s277 + $0x8] sm:$0xf]
        %v321 = vld [vmem:[%s277 + $0xc] sm:$0xf]
        %v322 = vld [vmem:[%s277 + $0x10] sm:$0xf]
        %v323 = vld [vmem:[%s277 + $0x14] sm:$0xf]
        %v324 = vld [vmem:[%s277 + $0x18] sm:$0xf]
        %v325 = vld [vmem:[%s277 + $0x1c] sm:$0xf]
        %vm326 = vcmask 1043456
        %v327 = vsel %vm326, %v318, 0.0
        %328 = vadd.xlane.f32.xlu0 %v327
        %v329 = vpop.xlane.xlu0 %328
        %v330 = vsel %vm326, %v319, 0.0
        %331 = vadd.xlane.f32.xlu0 %v330
        %v332 = vpop.xlane.xlu0 %331
        %v333 = vsel %vm326, %v320, 0.0
        %334 = vadd.xlane.f32.xlu0 %v333
        %v335 = vpop.xlane.xlu0 %334
        %v336 = vsel %vm326, %v321, 0.0
        %337 = vadd.xlane.f32.xlu0 %v336
        %v338 = vpop.xlane.xlu0 %337
        %v339 = vsel %vm326, %v322, 0.0
        %340 = vadd.xlane.f32.xlu0 %v339
        %v341 = vpop.xlane.xlu0 %340
        %v342 = vsel %vm326, %v323, 0.0
        %343 = vadd.xlane.f32.xlu0 %v342
        %v344 = vpop.xlane.xlu0 %343
        %v345 = vsel %vm326, %v324, 0.0
        %346 = vadd.xlane.f32.xlu0 %v345
        %v347 = vpop.xlane.xlu0 %346
        %v348 = vsel %vm326, %v325, 0.0
        %349 = vadd.xlane.f32.xlu0 %v348
        %v350 = vpop.xlane.xlu0 %349
        %v359 = vlaneseq
        %v360 = vand.u32 %v359, 127
        %v361 = vlaneseq
        %v362 = vshrl.u32 %v361, 7
        %v363 = vsub.s32 %v360, %v362
        %v364 = vrot.slane %v329, %v363
        %v365 = vlaneseq
        %v366 = vshrl.u32 %v365, 7
        %v367 = vsub.s32 %v360, %v366
        %v368 = vrot.slane %v332, %v367
        %v369 = vlaneseq
        %v370 = vshrl.u32 %v369, 7
        %v371 = vsub.s32 %v360, %v370
        %v372 = vrot.slane %v335, %v371
        %v373 = vlaneseq
        %v374 = vshrl.u32 %v373, 7
        %v375 = vsub.s32 %v360, %v374
        %v376 = vrot.slane %v338, %v375
        %v377 = vlaneseq
        %v378 = vshrl.u32 %v377, 7
        %v379 = vsub.s32 %v360, %v378
        %v380 = vrot.slane %v341, %v379
        %v381 = vlaneseq
        %v382 = vshrl.u32 %v381, 7
        %v383 = vsub.s32 %v360, %v382
        %v384 = vrot.slane %v344, %v383
        %v385 = vlaneseq
        %v386 = vshrl.u32 %v385, 7
        %v387 = vsub.s32 %v360, %v386
        %v388 = vrot.slane %v347, %v387
        %v389 = vlaneseq
        %v390 = vshrl.u32 %v389, 7
        %v391 = vsub.s32 %v360, %v390
        %v392 = vrot.slane %v350, %v391
        %vm393 = vcmask 1041409
        %v394 = vsel %vm393, %v368, %v364
        %vm395 = vcmask 1042434
        %v396 = vsel %vm395, %v372, %v394
        %vm397 = vcmask 1043459
        %v398 = vsel %vm397, %v376, %v396
        %vm399 = vcmask 1044484
        %v400 = vsel %vm399, %v380, %v398
        %vm401 = vcmask 1045509
        %v402 = vsel %vm401, %v384, %v400
        %vm403 = vcmask 1046534
        %v404 = vsel %vm403, %v388, %v402
        %vm405 = vcmask 1047559
        %v406 = vsel %vm405, %v392, %v404
        %v408 = vadd.f32 %v317, %v406
        %vm409 = vcmask 31744
        %410 = vst.msk [vmem:[#allocation2] sm:$0xff] %vm409, %v408
        %p411 = scmp.eq.s32.totalorder %s23, 1
        // Predicated region
        $region65: #{tpu_custom_call.1} parent=47 // pred_check
          %p412 = pneg %p411
        $region66: #{tpu_custom_call.1} parent=47 // pred_check_branch
          %414 = sbr.rel (%p412) target = $region68
        $region67: #{tpu_custom_call.1} parent=47 // pred_region
          %v415 = vld [vmem:[#allocation2] sm:$0xff]
          %v416 = vmul.f32 %v415, 0.00390625
          %v417 = vld [vmem:[#allocation6] sm:$0xff]
          %v418 = vld [vmem:[%s2] sm:$0x3]
          %v420 = vlaneseq
          %v421 = vshrl.u32 %v420, 7
          %v422 = vsub.s32 0, %v421
          %v423 = vrot.slane %v418, %v422
          %v424 = vlaneseq
          %v425 = vshrl.u32 %v424, 7
          %v426 = vsub.s32 1, %v425
          %v427 = vrot.slane %v418, %v426
          %v431 = vcombine.high %v417, %v417
          %v433 = vsel %vm409, %v416, 0
          %v435 = vsel %vm326, %v417, 0
          %v437 = vsel %vm326, %v431, 0
          %439 = vmatprep.subr.mxu0 0.0
          %440 = vmatpush1.msra.mxu0 0.0
          %441 = vmatprep.subr.mxu0 0.0
          %442 = vmatpush1.msra.mxu0 0.0
          %443 = vmatprep.subr.mxu0 0.0
          %444 = vmatpush1.msra.mxu0 0.0
          %445 = vmatprep.subr.mxu0 0.0
          %446 = vmatpush1.msra.mxu0 0.0
          %447 = vmatprep.subr.mxu0 0.0
          %448 = vmatpush1.msra.mxu0 0.0
          %449 = vmatprep.subr.mxu0 0.0
          %450 = vmatpush1.msra.mxu0 0.0
          %451 = vmatprep.subr.mxu0 0.0
          %452 = vmatpush1.msra.mxu0 0.0
          %453 = vmatprep.subr.mxu0 0.0
          %454 = vmatpush1.msra.mxu0 0.0
          %455 = vmatprep.subr.mxu0 0.0
          %456 = vmatpush1.msra.mxu0 0.0
          %457 = vmatprep.subr.mxu0 0.0
          %458 = vmatpush1.msra.mxu0 0.0
          %459 = vmatprep.subr.mxu0 0.0
          %460 = vmatpush1.msra.mxu0 0.0
          %461 = vmatprep.subr.mxu0 0.0
          %462 = vmatpush1.msra.mxu0 0.0
          %463 = vmatprep.subr.mxu0 0.0
          %464 = vmatpush1.msra.mxu0 0.0
          %465 = vmatprep.subr.mxu0 0.0
          %466 = vmatpush1.msra.mxu0 0.0
          %467 = vmatprep.subr.mxu0 0.0
          %468 = vmatpush1.msra.mxu0 0.0
          %469 = vmatprep.subr.mxu0 %v437
          %470 = vmatpush1.msra.mxu0 %v435
          %471 = vmatprep.subr.mxu0 0.0
          %472 = vmatpush2.msra.mxu0 0.0
          %473 = vmatprep.subr.mxu0 0.0
          %474 = vmatpush2.msra.mxu0 0.0
          %475 = vmatprep.subr.mxu0 0.0
          %476 = vmatpush2.msra.mxu0 0.0
          %477 = vmatprep.subr.mxu0 0.0
          %478 = vmatpush2.msra.mxu0 0.0
          %479 = vmatprep.subr.mxu0 0.0
          %480 = vmatpush2.msra.mxu0 0.0
          %481 = vmatprep.subr.mxu0 0.0
          %482 = vmatpush2.msra.mxu0 0.0
          %483 = vmatprep.subr.mxu0 0.0
          %484 = vmatpush2.msra.mxu0 0.0
          %485 = vmatprep.subr.mxu0 0.0
          %486 = vmatpush2.msra.mxu0 0.0
          %487 = vmatprep.subr.mxu0 0.0
          %488 = vmatpush2.msra.mxu0 0.0
          %489 = vmatprep.subr.mxu0 0.0
          %490 = vmatpush2.msra.mxu0 0.0
          %491 = vmatprep.subr.mxu0 0.0
          %492 = vmatpush2.msra.mxu0 0.0
          %493 = vmatprep.subr.mxu0 0.0
          %494 = vmatpush2.msra.mxu0 0.0
          %495 = vmatprep.subr.mxu0 0.0
          %496 = vmatpush2.msra.mxu0 0.0
          %497 = vmatprep.subr.mxu0 0.0
          %498 = vmatpush2.msra.mxu0 0.0
          %499 = vmatprep.subr.mxu0 0.0
          %500 = vmatpush2.msra.mxu0 0.0
          %501 = vmatprep.subr.mxu0 0.0
          %502 = vmatpush2.msra.mxu0 0.0
          %503 = vmatprep.mubr.f32.mxu0 0.0
          %504 = vmatmul.mubr.f32.gmra.mxu0 %v433
          %v505 = vpop.f32.mrf.mxu0
          %v506 = vadd.f32 %v423, %v505
          %v507 = vpop.f32.mrf.mxu0
          %v508 = vadd.f32 %v427, %v507
          %509 = vdwg.mxu0
          %v510 = vld [vmem:[#allocation8] sm:$0xff]
          %v511 = vld [vmem:[#allocation8 + $0x8] sm:$0xff]
          %v512 = vld [vmem:[#allocation8 + $0x10] sm:$0xff]
          %v513 = vld [vmem:[#allocation8 + $0x18] sm:$0xff]
          %v514 = vld [vmem:[#allocation8 + $0x20] sm:$0xff]
          %v515 = vld [vmem:[#allocation8 + $0x28] sm:$0xff]
          %v516 = vld [vmem:[#allocation8 + $0x30] sm:$0xff]
          %v517 = vld [vmem:[#allocation8 + $0x38] sm:$0xff]
          %v518 = vld [vmem:[#allocation8 + $0x40] sm:$0xff]
          %v519 = vld [vmem:[#allocation8 + $0x48] sm:$0xff]
          %v520 = vld [vmem:[#allocation8 + $0x50] sm:$0xff]
          %v521 = vld [vmem:[#allocation8 + $0x58] sm:$0xff]
          %v522 = vld [vmem:[#allocation8 + $0x60] sm:$0xff]
          %v523 = vld [vmem:[#allocation8 + $0x68] sm:$0xff]
          %v524 = vld [vmem:[#allocation8 + $0x70] sm:$0xff]
          %v525 = vld [vmem:[#allocation8 + $0x78] sm:$0xff]
          %v526 = vld [vmem:[#allocation8 + $0x80] sm:$0xff]
          %v527 = vld [vmem:[#allocation8 + $0x88] sm:$0xff]
          %v528 = vld [vmem:[#allocation8 + $0x90] sm:$0xff]
          %v529 = vld [vmem:[#allocation8 + $0x98] sm:$0xff]
          %v530 = vld [vmem:[#allocation8 + $0xa0] sm:$0xff]
          %v531 = vld [vmem:[#allocation8 + $0xa8] sm:$0xff]
          %v532 = vld [vmem:[#allocation8 + $0xb0] sm:$0xff]
          %v533 = vld [vmem:[#allocation8 + $0xb8] sm:$0xff]
          %v534 = vld [vmem:[#allocation8 + $0xc0] sm:$0xff]
          %v535 = vld [vmem:[#allocation8 + $0xc8] sm:$0xff]
          %v536 = vld [vmem:[#allocation8 + $0xd0] sm:$0xff]
          %v537 = vld [vmem:[#allocation8 + $0xd8] sm:$0xff]
          %v538 = vld [vmem:[#allocation8 + $0xe0] sm:$0xff]
          %v539 = vld [vmem:[#allocation8 + $0xe8] sm:$0xff]
          %v540 = vld [vmem:[#allocation8 + $0xf0] sm:$0xff]
          %v541 = vld [vmem:[#allocation8 + $0xf8] sm:$0xff]
          %v542 = vld [vmem:[%s4] sm:$0x1]
          %v544 = vlaneseq
          %v545 = vshrl.u32 %v544, 7
          %v546 = vsub.s32 0, %v545
          %v547 = vrot.slane %v542, %v546
          %549 = vmatprep.subr.mxu0 0.0
          %550 = vmatpush1.msra.mxu0 %v525
          %551 = vmatprep.subr.mxu0 0.0
          %552 = vmatpush1.msra.mxu0 %v524
          %553 = vmatprep.subr.mxu0 0.0
          %554 = vmatpush1.msra.mxu0 %v523
          %555 = vmatprep.subr.mxu0 0.0
          %556 = vmatpush1.msra.mxu0 %v522
          %557 = vmatprep.subr.mxu0 0.0
          %558 = vmatpush1.msra.mxu0 %v521
          %559 = vmatprep.subr.mxu0 0.0
          %560 = vmatpush1.msra.mxu0 %v520
          %561 = vmatprep.subr.mxu0 0.0
          %562 = vmatpush1.msra.mxu0 %v519
          %563 = vmatprep.subr.mxu0 0.0
          %564 = vmatpush1.msra.mxu0 %v518
          %565 = vmatprep.subr.mxu0 0.0
          %566 = vmatpush1.msra.mxu0 %v517
          %567 = vmatprep.subr.mxu0 0.0
          %568 = vmatpush1.msra.mxu0 %v516
          %569 = vmatprep.subr.mxu0 0.0
          %570 = vmatpush1.msra.mxu0 %v515
          %571 = vmatprep.subr.mxu0 0.0
          %572 = vmatpush1.msra.mxu0 %v514
          %573 = vmatprep.subr.mxu0 0.0
          %574 = vmatpush1.msra.mxu0 %v513
          %575 = vmatprep.subr.mxu0 0.0
          %576 = vmatpush1.msra.mxu0 %v512
          %577 = vmatprep.subr.mxu0 0.0
          %578 = vmatpush1.msra.mxu0 %v511
          %579 = vmatprep.subr.mxu0 0.0
          %580 = vmatpush1.msra.mxu0 %v510
          %581 = vmatprep.subr.mxu0 0.0
          %582 = vmatpush2.msra.mxu0 %v541
          %583 = vmatprep.subr.mxu0 0.0
          %584 = vmatpush2.msra.mxu0 %v540
          %585 = vmatprep.subr.mxu0 0.0
          %586 = vmatpush2.msra.mxu0 %v539
          %587 = vmatprep.subr.mxu0 0.0
          %588 = vmatpush2.msra.mxu0 %v538
          %589 = vmatprep.subr.mxu0 0.0
          %590 = vmatpush2.msra.mxu0 %v537
          %591 = vmatprep.subr.mxu0 0.0
          %592 = vmatpush2.msra.mxu0 %v536
          %593 = vmatprep.subr.mxu0 0.0
          %594 = vmatpush2.msra.mxu0 %v535
          %595 = vmatprep.subr.mxu0 0.0
          %596 = vmatpush2.msra.mxu0 %v534
          %597 = vmatprep.subr.mxu0 0.0
          %598 = vmatpush2.msra.mxu0 %v533
          %599 = vmatprep.subr.mxu0 0.0
          %600 = vmatpush2.msra.mxu0 %v532
          %601 = vmatprep.subr.mxu0 0.0
          %602 = vmatpush2.msra.mxu0 %v531
          %603 = vmatprep.subr.mxu0 0.0
          %604 = vmatpush2.msra.mxu0 %v530
          %605 = vmatprep.subr.mxu0 0.0
          %606 = vmatpush2.msra.mxu0 %v529
          %607 = vmatprep.subr.mxu0 0.0
          %608 = vmatpush2.msra.mxu0 %v528
          %609 = vmatprep.subr.mxu0 0.0
          %610 = vmatpush2.msra.mxu0 %v527
          %611 = vmatprep.subr.mxu0 0.0
          %612 = vmatpush2.msra.mxu0 %v526
          %613 = vmatprep.mubr.f32.mxu0 %v508
          %614 = vmatmul.mubr.f32.gmra.mxu0 %v506
          %v615 = vpop.f32.mrf.mxu0
          %v616 = vadd.f32 %v547, %v615
          %v617 = vpop.f32.mrf.mxu0
          %618 = vdwg.mxu0
          %v619 = vrot.slane %v616, 4
          %v620 = vadd.f32 %v616, %v619
          %v621 = vrot.slane %v620, 2
          %v622 = vadd.f32 %v620, %v621
          %v623 = vrot.slane %v622, 1
          %v624 = vadd.f32 %v622, %v623
          %v625 = vrcp.pop 8.0
          %v626 = vmul.f32 %v624, %v625
          %v627 = vsub.f32 %v616, %v626
          %v628 = vmul.f32 %v627, %v627
          %v629 = vrot.slane %v628, 4
          %v630 = vadd.f32 %v628, %v629
          %v631 = vrot.slane %v630, 2
          %v632 = vadd.f32 %v630, %v631
          %v633 = vrot.slane %v632, 1
          %v634 = vadd.f32 %v632, %v633
          %v635 = vmul.f32 %v634, %v625
          %v636 = vadd.f32 %v635, 1e-05
          %v637 = vrsqrt.pop %v636
          %v638 = vmul.f32 %v627, %v637
          %v639 = vld [vmem:[%s5] sm:$0x1]
          %v641 = vlaneseq
          %v642 = vshrl.u32 %v641, 7
          %v643 = vsub.s32 0, %v642
          %v644 = vrot.slane %v639, %v643
          %v646 = vmul.f32 %v644, %v638
          %v647 = vld [vmem:[%s6] sm:$0x1]
          %v649 = vlaneseq
          %v650 = vshrl.u32 %v649, 7
          %v651 = vsub.s32 0, %v650
          %v652 = vrot.slane %v647, %v651
          %v654 = vadd.f32 %v646, %v652
          %655 = vst [vmem:[#allocation9] sm:$0xff] %v654
        $region68: #{tpu_custom_call.1} parent=47 // pred_fallthru
          _
        // Predicated region
        $region69: #{tpu_custom_call.1} parent=47 // pred_check
          %p656 = pneg %p188
        $region70: #{tpu_custom_call.1} parent=47 // pred_check_branch
          %658 = sbr.rel (%p656) target = $region72
        $region71: #{tpu_custom_call.1} parent=47 // pred_region
          %s660 = ssub.s32 128, 128
          %661 = vsyncadd [#allocation5], %s660
          %s663 = sshll.u32 [#allocation9], 4
          %s664 = int_to_ptr.vmem [resolvable:$true] %s663
          %666 = dma.vmem_to_hbm [thread:$0]  %s664, 128, %s7, [#allocation5]
        $region72: #{tpu_custom_call.1} parent=47 // pred_fallthru
          _
        // Predicated region
        $region73: #{tpu_custom_call.1} parent=47 // pred_check
          %p667 = pneg %p188
        $region74: #{tpu_custom_call.1} parent=47 // pred_check_branch
          %669 = sbr.rel (%p667) target = $region76
        $region75: #{tpu_custom_call.1} parent=47 // pred_region
          %670 = dma.done [#allocation5], 128
        $region76: #{tpu_custom_call.1} parent=47 // pred_fallthru
          _
      $region48: #{tpu_custom_call.1} parent=5 // pred_fallthru
        _
      %p671 = scmp.le.s32.totalorder 2, %s18
      // Predicated region
      $region77: #{tpu_custom_call.1} parent=5 // pred_check
        %p672 = pneg %p671
      $region78: #{tpu_custom_call.1} parent=5 // pred_check_branch
        %674 = sbr.rel (%p672) target = $region80
      $region79: #{tpu_custom_call.1} parent=5 // pred_region
        %s675 = ssub.s32 %s18, 2
      $region80: #{tpu_custom_call.1} parent=5 // pred_fallthru
        _
    $region6: #{tpu_custom_call.1} parent=1 // loop_footer
      %s22 = sadd.s32 1, %s18
    $region7: #{tpu_custom_call.1} parent=1 // loop_footer_branch
      %17 = sbr.rel target = $region3
    $region8: #{tpu_custom_call.1} parent=1 // loop_exit
      _
    %676 = vsyncpa [#allocation4], 1
    %s677 = scalar_lea.sflag [#allocation4], 1
    %678 = vsyncpa %s677, 1
    %679 = vsyncpa [#allocation7], 1
    %680 = vsyncpa [#allocation5], 1
    %s681 = scalar_lea.sflag [#allocation5], 1
    %682 = vsyncpa %s681, 1

</llo_original>
